<compile_context>
chip_gen: v6e
topology: v6e:2x2x1
jax: 0.10.0
libtpu: 0.0.40
codegen_flags: <defaults>
</compile_context>

<pallas_src>
import functools

import jax
import jax.numpy as jnp
from jax.experimental import pallas as pl
from jax.experimental.pallas import tpu as pltpu


# ----------------------------------------------------------------------------
# Kernel
# ----------------------------------------------------------------------------
def policy_net_kernel(x_ref, w1_ref, b1_ref, w2_ref, b2_ref, w3_ref, b3_ref,
                      prob_ref, *, use_vpu_fc1):
    x = x_ref[...]                                              # [TB, Ds] f32
    tb = x.shape[0]

    # ---- fc1 + ReLU -----------------------------------------------------
    if use_vpu_fc1:
        # K is tiny: a handful of broadcast FMAs on the (otherwise idle) VPU
        # avoids MXU push/drain latency for a <4%-utilized systolic pass.
        w1 = w1_ref[...].astype(jnp.float32)                    # [Ds, 64]
        h1 = jnp.broadcast_to(b1_ref[...], (tb, w1.shape[1]))
        for k in range(x.shape[1]):                             # static unroll
            h1 = h1 + x[:, k:k + 1] * w1[k:k + 1, :]
    else:
        h1 = jnp.dot(x.astype(jnp.bfloat16), w1_ref[...],
                     preferred_element_type=jnp.float32) + b1_ref[...]
    h1 = jnp.maximum(h1, 0.0)                                   # [TB, 64]

    # ---- fc2 + ReLU -----------------------------------------------------
    h2 = jnp.dot(h1.astype(jnp.bfloat16), w2_ref[...],
                 preferred_element_type=jnp.float32) + b2_ref[...]
    h2 = jnp.maximum(h2, 0.0)                                   # [TB, 32]

    # ---- fc3 (lane-padded to 128) ---------------------------------------
    logits = jnp.dot(h2.astype(jnp.bfloat16), w3_ref[...],
                     preferred_element_type=jnp.float32) + b3_ref[...]
    # padded columns: weight rows are 0, bias is -1e30 -> exp() == 0 below.

    # ---- numerically stable softmax over the 128-wide padded lane axis ---
    m = jnp.max(logits, axis=-1, keepdims=True)
    e = jnp.exp(logits - m)
    denom = jnp.sum(e, axis=-1, keepdims=True)
    prob_ref[...] = e / denom                                   # [TB, 128]


# ----------------------------------------------------------------------------
# Parameter helpers
# ----------------------------------------------------------------------------
def _round_up(x, m):
    return (x + m - 1) // m * m


def init_policy_net_params(key, dim_state, num_action):
    """nn.Linear-style init (uniform +/- 1/sqrt(fan_in)), weights stored as
    (in_features, out_features) i.e. transposed vs PyTorch, f32."""
    def linear(k, fan_in, fan_out):
        kw, kb = jax.random.split(k)
        bound = 1.0 / jnp.sqrt(jnp.float32(fan_in))
        w = jax.random.uniform(kw, (fan_in, fan_out), jnp.float32, -bound, bound)
        b = jax.random.uniform(kb, (1, fan_out), jnp.float32, -bound, bound)
        return w, b

    k1, k2, k3 = jax.random.split(key, 3)
    w1, b1 = linear(k1, dim_state, 64)
    w2, b2 = linear(k2, 64, 32)
    w3, b3 = linear(k3, 32, num_action)
    return {"w1": w1, "b1": b1, "w2": w2, "b2": b2, "w3": w3, "b3": b3}


def prepare_kernel_params(params_f32, num_action):
    """bf16 weights + lane-dense (128-padded) fc3.  Biases stay f32."""
    a_pad = max(128, _round_up(num_action, 128))
    w3 = jnp.zeros((params_f32["w3"].shape[0], a_pad), jnp.float32)
    w3 = w3.at[:, :num_action].set(params_f32["w3"])
    b3 = jnp.full((1, a_pad), -1e30, jnp.float32)
    b3 = b3.at[:, :num_action].set(params_f32["b3"])
    return {
        "w1": params_f32["w1"].astype(jnp.bfloat16),
        "b1": params_f32["b1"],
        "w2": params_f32["w2"].astype(jnp.bfloat16),
        "b2": params_f32["b2"],
        "w3": w3.astype(jnp.bfloat16),
        "b3": b3,
    }


# ----------------------------------------------------------------------------
# Wrapper
# ----------------------------------------------------------------------------
def policy_net_forward(state, kparams, num_action, *, tile_b=None):
    """state: [B, dim_state] f32, kparams: output of prepare_kernel_params."""
    B, dim_state = state.shape
    a_pad = kparams["w3"].shape[1]

    if tile_b is None:
        # big tiles when the batch is big (pipelining), tight when it's tiny
        tile_b = min(512, _round_up(max(B, 1), 8))
    tile_b = _round_up(tile_b, 8)

    b_pad = _round_up(B, tile_b)
    if b_pad != B:
        state = jnp.pad(state, ((0, b_pad - B), (0, 0)))

    use_vpu_fc1 = dim_state <= 8
    kernel = functools.partial(policy_net_kernel, use_vpu_fc1=use_vpu_fc1)

    resident = lambda a: pl.BlockSpec(a.shape, lambda i: (0,) * a.ndim)

    out = pl.pallas_call(
        kernel,
        out_shape=jax.ShapeDtypeStruct((b_pad, a_pad), jnp.float32),
        grid=(b_pad // tile_b,),
        in_specs=[
            pl.BlockSpec((tile_b, dim_state), lambda i: (i, 0)),   # x: batch-tiled
            resident(kparams["w1"]), resident(kparams["b1"]),
            resident(kparams["w2"]), resident(kparams["b2"]),
            resident(kparams["w3"]), resident(kparams["b3"]),
        ],
        out_specs=pl.BlockSpec((tile_b, a_pad), lambda i: (i, 0)),  # lane-dense out
        compiler_params=pltpu.CompilerParams(
            dimension_semantics=("parallel",)),
    )(state, kparams["w1"], kparams["b1"], kparams["w2"], kparams["b2"],
      kparams["w3"], kparams["b3"])

    return out[:B, :num_action]


# ----------------------------------------------------------------------------
# References
# ----------------------------------------------------------------------------
def policy_net_ref_f32(state, params_f32):
    """Pure f32 reference matching the PyTorch module semantics."""
    h1 = jax.nn.relu(state @ params_f32["w1"] + params_f32["b1"])
    h2 = jax.nn.relu(h1 @ params_f32["w2"] + params_f32["b2"])
    logits = h2 @ params_f32["w3"] + params_f32["b3"]
    return jax.nn.softmax(logits, axis=-1)


def policy_net_ref_mirror(state, kparams, num_action, use_vpu_fc1):
    """Mirrors the kernel's bf16/f32 mixed math for a tight comparison."""
    if use_vpu_fc1:
        w1 = kparams["w1"].astype(jnp.float32)
        h1 = jnp.broadcast_to(kparams["b1"], (state.shape[0], w1.shape[1]))
        for k in range(state.shape[1]):
            h1 = h1 + state[:, k:k + 1] * w1[k:k + 1, :]
    else:
        h1 = jnp.dot(state.astype(jnp.bfloat16), kparams["w1"],
                     preferred_element_type=jnp.float32) + kparams["b1"]
    h1 = jax.nn.relu(h1)
    h2 = jax.nn.relu(jnp.dot(h1.astype(jnp.bfloat16), kparams["w2"],
                             preferred_element_type=jnp.float32) + kparams["b2"])
    logits = jnp.dot(h2.astype(jnp.bfloat16), kparams["w3"],
                     preferred_element_type=jnp.float32) + kparams["b3"]
    return jax.nn.softmax(logits[:, :num_action], axis=-1)


# ----------------------------------------------------------------------------
# Self-test
# ----------------------------------------------------------------------------
if __name__ == "__main__":
    key = jax.random.PRNGKey(0)
    k_params, k_s1, k_s2 = jax.random.split(key, 3)

    dim_state, num_action = 4, 2          # CartPole-like
    params_f32 = init_policy_net_params(k_params, dim_state, num_action)
    kparams = prepare_kernel_params(params_f32, num_action)
    use_vpu_fc1 = dim_state <= 8

    def check(prob, state):
        ref_tight = policy_net_ref_mirror(state, kparams, num_action, use_vpu_fc1)
        ref_f32 = policy_net_ref_f32(state, params_f32)
        assert prob.shape == (state.shape[0], num_action)
        assert jnp.allclose(prob, ref_tight, atol=1e-4, rtol=1e-4), "mirror mismatch"
        assert jnp.allclose(prob, ref_f32, atol=2e-2), "f32 semantics drift"
        assert jnp.allclose(jnp.sum(prob, axis=-1), 1.0, atol=1e-5), "rows != 1"

    # 1) tiny single-tile batch (typical per-step A2C inference)
    B1 = 8
    s1 = jax.random.normal(k_s1, (B1, dim_state), jnp.float32)
    p1 = jax.block_until_ready(policy_net_forward(s1, kparams, num_action))
    check(p1, s1)

    # 2) larger batch: exercises the pipelined batch grid (3 tiles of 128)
    #    and the non-divisible-batch padding path.
    B2 = 300
    s2 = jax.random.normal(k_s2, (B2, dim_state), jnp.float32)
    p2 = jax.block_until_ready(
        policy_net_forward(s2, kparams, num_action, tile_b=128))
    check(p2, s2)

    print("KERNEL_OK")
</pallas_src>

<mosaic_0001>
module attributes {stable_mosaic.version = 11 : i64} {
  func.func @policy_net_kernel(%arg0: i32, %arg1: memref<8x4xf32, #tpu.memory_space<vmem>>, %arg2: memref<4x64xbf16, #tpu.memory_space<vmem>>, %arg3: memref<1x64xf32, #tpu.memory_space<vmem>>, %arg4: memref<64x32xbf16, #tpu.memory_space<vmem>>, %arg5: memref<1x32xf32, #tpu.memory_space<vmem>>, %arg6: memref<32x128xbf16, #tpu.memory_space<vmem>>, %arg7: memref<1x128xf32, #tpu.memory_space<vmem>>, %arg8: memref<8x128xf32, #tpu.memory_space<vmem>>) attributes {dimension_semantics = [#tpu.dimension_semantics<parallel>], iteration_bounds = array<i64: 1>, scalar_prefetch = 0 : i64, scratch_operands = 0 : i64, tpu.core_type = #tpu.core_type<tc>, window_params = [{transform_indices = @transform_0, window_bounds = array<i64: 8, 4>}, {pipeline_mode = #tpu.pipeline_mode<synchronous>, transform_indices = @transform_1, window_bounds = array<i64: 4, 64>}, {pipeline_mode = #tpu.pipeline_mode<synchronous>, transform_indices = @transform_2, window_bounds = array<i64: 1, 64>}, {pipeline_mode = #tpu.pipeline_mode<synchronous>, transform_indices = @transform_3, window_bounds = array<i64: 64, 32>}, {pipeline_mode = #tpu.pipeline_mode<synchronous>, transform_indices = @transform_4, window_bounds = array<i64: 1, 32>}, {pipeline_mode = #tpu.pipeline_mode<synchronous>, transform_indices = @transform_5, window_bounds = array<i64: 32, 128>}, {pipeline_mode = #tpu.pipeline_mode<synchronous>, transform_indices = @transform_6, window_bounds = array<i64: 1, 128>}, {transform_indices = @transform_7, window_bounds = array<i64: 8, 128>}]} {
    %c0 = arith.constant 0 : index
    %c0_0 = arith.constant 0 : index
    %0 = vector.load %arg1[%c0, %c0_0] : memref<8x4xf32, #tpu.memory_space<vmem>>, vector<8x4xf32>
    %c0_1 = arith.constant 0 : index
    %c0_2 = arith.constant 0 : index
    %1 = vector.load %arg2[%c0_1, %c0_2] : memref<4x64xbf16, #tpu.memory_space<vmem>>, vector<4x64xbf16>
    %2 = arith.extf %1 : vector<4x64xbf16> to vector<4x64xf32>
    %c0_3 = arith.constant 0 : index
    %c0_4 = arith.constant 0 : index
    %3 = vector.load %arg3[%c0_3, %c0_4] : memref<1x64xf32, #tpu.memory_space<vmem>>, vector<1x64xf32>
    %4 = vector.shape_cast %3 : vector<1x64xf32> to vector<1x64xf32>
    %5 = vector.broadcast %4 : vector<1x64xf32> to vector<8x64xf32>
    %6 = vector.extract_strided_slice %0 {offsets = [0, 0], sizes = [8, 1], strides = [1, 1]} : vector<8x4xf32> to vector<8x1xf32>
    %7 = vector.extract_strided_slice %2 {offsets = [0, 0], sizes = [1, 64], strides = [1, 1]} : vector<4x64xf32> to vector<1x64xf32>
    %8 = vector.broadcast %6 : vector<8x1xf32> to vector<8x64xf32>
    %9 = vector.broadcast %7 : vector<1x64xf32> to vector<8x64xf32>
    %10 = arith.mulf %8, %9 : vector<8x64xf32>
    %11 = arith.addf %5, %10 : vector<8x64xf32>
    %12 = vector.extract_strided_slice %0 {offsets = [0, 1], sizes = [8, 1], strides = [1, 1]} : vector<8x4xf32> to vector<8x1xf32>
    %13 = vector.extract_strided_slice %2 {offsets = [1, 0], sizes = [1, 64], strides = [1, 1]} : vector<4x64xf32> to vector<1x64xf32>
    %14 = vector.broadcast %12 : vector<8x1xf32> to vector<8x64xf32>
    %15 = vector.broadcast %13 : vector<1x64xf32> to vector<8x64xf32>
    %16 = arith.mulf %14, %15 : vector<8x64xf32>
    %17 = arith.addf %11, %16 : vector<8x64xf32>
    %18 = vector.extract_strided_slice %0 {offsets = [0, 2], sizes = [8, 1], strides = [1, 1]} : vector<8x4xf32> to vector<8x1xf32>
    %19 = vector.extract_strided_slice %2 {offsets = [2, 0], sizes = [1, 64], strides = [1, 1]} : vector<4x64xf32> to vector<1x64xf32>
    %20 = vector.broadcast %18 : vector<8x1xf32> to vector<8x64xf32>
    %21 = vector.broadcast %19 : vector<1x64xf32> to vector<8x64xf32>
    %22 = arith.mulf %20, %21 : vector<8x64xf32>
    %23 = arith.addf %17, %22 : vector<8x64xf32>
    %24 = vector.extract_strided_slice %0 {offsets = [0, 3], sizes = [8, 1], strides = [1, 1]} : vector<8x4xf32> to vector<8x1xf32>
    %25 = vector.extract_strided_slice %2 {offsets = [3, 0], sizes = [1, 64], strides = [1, 1]} : vector<4x64xf32> to vector<1x64xf32>
    %26 = vector.broadcast %24 : vector<8x1xf32> to vector<8x64xf32>
    %27 = vector.broadcast %25 : vector<1x64xf32> to vector<8x64xf32>
    %28 = arith.mulf %26, %27 : vector<8x64xf32>
    %29 = arith.addf %23, %28 : vector<8x64xf32>
    %cst = arith.constant 0.000000e+00 : f32
    %30 = vector.broadcast %cst : f32 to vector<8x64xf32>
    %31 = arith.maximumf %29, %30 : vector<8x64xf32>
    %32 = arith.truncf %31 : vector<8x64xf32> to vector<8x64xbf16>
    %c0_5 = arith.constant 0 : index
    %c0_6 = arith.constant 0 : index
    %33 = vector.load %arg4[%c0_5, %c0_6] : memref<64x32xbf16, #tpu.memory_space<vmem>>, vector<64x32xbf16>
    %cst_7 = arith.constant dense<0.000000e+00> : vector<8x32xf32>
    %34 = tpu.matmul %32, %33, %cst_7 {dimension_numbers = #tpu.dot_dimension_numbers<[1], [0], [0], [1], [0, 0, 1, 1], [], []>} : vector<8x64xbf16>, vector<64x32xbf16>, vector<8x32xf32> -> vector<8x32xf32>
    %c0_8 = arith.constant 0 : index
    %c0_9 = arith.constant 0 : index
    %35 = vector.load %arg5[%c0_8, %c0_9] : memref<1x32xf32, #tpu.memory_space<vmem>>, vector<1x32xf32>
    %36 = vector.broadcast %35 : vector<1x32xf32> to vector<8x32xf32>
    %37 = arith.addf %34, %36 : vector<8x32xf32>
    %cst_10 = arith.constant 0.000000e+00 : f32
    %38 = vector.broadcast %cst_10 : f32 to vector<8x32xf32>
    %39 = arith.maximumf %37, %38 : vector<8x32xf32>
    %40 = arith.truncf %39 : vector<8x32xf32> to vector<8x32xbf16>
    %c0_11 = arith.constant 0 : index
    %c0_12 = arith.constant 0 : index
    %41 = vector.load %arg6[%c0_11, %c0_12] : memref<32x128xbf16, #tpu.memory_space<vmem>>, vector<32x128xbf16>
    %cst_13 = arith.constant dense<0.000000e+00> : vector<8x128xf32>
    %42 = tpu.matmul %40, %41, %cst_13 {dimension_numbers = #tpu.dot_dimension_numbers<[1], [0], [0], [1], [0, 0, 1, 1], [], []>} : vector<8x32xbf16>, vector<32x128xbf16>, vector<8x128xf32> -> vector<8x128xf32>
    %c0_14 = arith.constant 0 : index
    %c0_15 = arith.constant 0 : index
    %43 = vector.load %arg7[%c0_14, %c0_15] : memref<1x128xf32, #tpu.memory_space<vmem>>, vector<1x128xf32>
    %44 = vector.broadcast %43 : vector<1x128xf32> to vector<8x128xf32>
    %45 = arith.addf %42, %44 : vector<8x128xf32>
    %cst_16 = arith.constant dense<0xFF800000> : vector<8xf32>
    %46 = vector.multi_reduction <maximumf>, %45, %cst_16 [1] : vector<8x128xf32> to vector<8xf32>
    %47 = vector.shape_cast %46 : vector<8xf32> to vector<8x1xf32>
    %48 = vector.broadcast %47 : vector<8x1xf32> to vector<8x128xf32>
    %49 = arith.subf %45, %48 : vector<8x128xf32>
    %50 = math.exp %49 : vector<8x128xf32>
    %cst_17 = arith.constant dense<0.000000e+00> : vector<8xf32>
    %51 = vector.multi_reduction <add>, %50, %cst_17 [1] : vector<8x128xf32> to vector<8xf32>
    %52 = vector.shape_cast %51 : vector<8xf32> to vector<8x1xf32>
    %53 = vector.broadcast %52 : vector<8x1xf32> to vector<8x128xf32>
    %54 = arith.divf %50, %53 : vector<8x128xf32>
    %c0_18 = arith.constant 0 : index
    %c0_19 = arith.constant 0 : index
    %55 = vector.load %arg8[%c0_18, %c0_19] : memref<8x128xf32, #tpu.memory_space<vmem>>, vector<8x128xf32>
    tpu.vector_store %arg8[%c0_18, %c0_19], %54 {strides = array<i32>} : memref<8x128xf32, #tpu.memory_space<vmem>>, vector<8x128xf32>,
    return
  }
  func.func @transform_0(%arg0: i32) -> (i32, i32) {
    %c0_i32 = arith.constant 0 : i32
    %c0_i32_0 = arith.constant 0 : i32
    return %arg0, %c0_i32 : i32, i32
  }
  func.func @transform_1(%arg0: i32) -> (i32, i32) {
    %c0_i32 = arith.constant 0 : i32
    %c0_i32_0 = arith.constant 0 : i32
    %c0_i32_1 = arith.constant 0 : i32
    return %c0_i32, %c0_i32_0 : i32, i32
  }
  func.func @transform_2(%arg0: i32) -> (i32, i32) {
    %c0_i32 = arith.constant 0 : i32
    %c0_i32_0 = arith.constant 0 : i32
    %c0_i32_1 = arith.constant 0 : i32
    return %c0_i32, %c0_i32_0 : i32, i32
  }
  func.func @transform_3(%arg0: i32) -> (i32, i32) {
    %c0_i32 = arith.constant 0 : i32
    %c0_i32_0 = arith.constant 0 : i32
    %c0_i32_1 = arith.constant 0 : i32
    return %c0_i32, %c0_i32_0 : i32, i32
  }
  func.func @transform_4(%arg0: i32) -> (i32, i32) {
    %c0_i32 = arith.constant 0 : i32
    %c0_i32_0 = arith.constant 0 : i32
    %c0_i32_1 = arith.constant 0 : i32
    return %c0_i32, %c0_i32_0 : i32, i32
  }
  func.func @transform_5(%arg0: i32) -> (i32, i32) {
    %c0_i32 = arith.constant 0 : i32
    %c0_i32_0 = arith.constant 0 : i32
    %c0_i32_1 = arith.constant 0 : i32
    return %c0_i32, %c0_i32_0 : i32, i32
  }
  func.func @transform_6(%arg0: i32) -> (i32, i32) {
    %c0_i32 = arith.constant 0 : i32
    %c0_i32_0 = arith.constant 0 : i32
    %c0_i32_1 = arith.constant 0 : i32
    return %c0_i32, %c0_i32_0 : i32, i32
  }
  func.func @transform_7(%arg0: i32) -> (i32, i32) {
    %c0_i32 = arith.constant 0 : i32
    %c0_i32_0 = arith.constant 0 : i32
    return %arg0, %c0_i32 : i32, i32
  }
}

</mosaic_0001>

<llo_original>
// kernel: tpu_custom_call.1
$region0: #{tpu_custom_call.1}
  #allocation0 [shape = 'u32[]', space=smem, size = 0x4, offset = 0x4, fixed_abs, tag = 'smem constant byte address 0x4 - core index']
  #allocation1 [shape = 'u32[144,128]{1,0:T(1,128)}', space=vmem, size = 0x12000, scoped, tag = 'internal scratch']
  %s0 = inlined_call_operand.vmem [shape: f32[8,4], index: 0, kind: input, shape index: {}]
  %s1 = inlined_call_operand.vmem [shape: bf16[4,64], index: 1, kind: input, shape index: {}]
  %s2 = inlined_call_operand.vmem [shape: f32[1,64], index: 2, kind: input, shape index: {}]
  %s3 = inlined_call_operand.vmem [shape: bf16[64,32], index: 3, kind: input, shape index: {}]
  %s4 = inlined_call_operand.vmem [shape: f32[1,32], index: 4, kind: input, shape index: {}]
  %s5 = inlined_call_operand.vmem [shape: bf16[32,128], index: 5, kind: input, shape index: {}]
  %s6 = inlined_call_operand.vmem [shape: f32[1,128], index: 6, kind: input, shape index: {}]
  %s7 = inlined_call_operand.hbm [shape: f32[8,128], index: 7, kind: output, shape index: {}]
  %s8 = sld [smem:[#allocation0]]
  $region38: #{tpu_custom_call.1} parent=0
    _
  %s10 = ssub.s32 1, %s8
  %s11 = scalar_select 0, %s10, %s8
  $region1: #{tpu_custom_call.1} parent=0
    #allocation2 [shape = 'u8[4096]{0}', space=vmem, size = 0x1000, scoped, tag = 'output window, operand 0, single buffered']
    #allocation3 [shape = 's32[1]{0}', space=sflag, size = 0x4, scoped, tag = 'scoped memory for tpu_custom_call.1']
    %12 = vsyncpa [#allocation3], 0
    // Predicated region
    $region2: #{tpu_custom_call.1} parent=1 // pred_check
      _
    $region3: #{tpu_custom_call.1} parent=1 // pred_check_branch
      %14 = sbr.rel (0) target = $region5
    $region4: #{tpu_custom_call.1} parent=1 // pred_region
      _
    $region5: #{tpu_custom_call.1} parent=1 // pred_fallthru
      _
    // Predicated region
    $region6: #{tpu_custom_call.1} parent=1 // pred_check
      _
    $region7: #{tpu_custom_call.1} parent=1 // pred_check_branch
      %16 = sbr.rel (0) target = $region9
    $region8: #{tpu_custom_call.1} parent=1 // pred_region
      _
    $region9: #{tpu_custom_call.1} parent=1 // pred_fallthru
      _
    // Predicated region
    $region10: #{tpu_custom_call.1} parent=1 // pred_check
      _
    $region11: #{tpu_custom_call.1} parent=1 // pred_check_branch
      %18 = sbr.rel (0) target = $region13
    $region12: #{tpu_custom_call.1} parent=1 // pred_region
      _
    $region13: #{tpu_custom_call.1} parent=1 // pred_fallthru
      _
    // Predicated region
    $region14: #{tpu_custom_call.1} parent=1 // pred_check
      _
    $region15: #{tpu_custom_call.1} parent=1 // pred_check_branch
      %20 = sbr.rel (0) target = $region17
    $region16: #{tpu_custom_call.1} parent=1 // pred_region
      _
    $region17: #{tpu_custom_call.1} parent=1 // pred_fallthru
      _
    // Predicated region
    $region18: #{tpu_custom_call.1} parent=1 // pred_check
      _
    $region19: #{tpu_custom_call.1} parent=1 // pred_check_branch
      %22 = sbr.rel (0) target = $region21
    $region20: #{tpu_custom_call.1} parent=1 // pred_region
      _
    $region21: #{tpu_custom_call.1} parent=1 // pred_fallthru
      _
    // Predicated region
    $region22: #{tpu_custom_call.1} parent=1 // pred_check
      _
    $region23: #{tpu_custom_call.1} parent=1 // pred_check_branch
      %24 = sbr.rel (0) target = $region25
    $region24: #{tpu_custom_call.1} parent=1 // pred_region
      _
    $region25: #{tpu_custom_call.1} parent=1 // pred_fallthru
      _
    // Predicated region
    $region26: #{tpu_custom_call.1} parent=1 // pred_check
      _
    $region27: #{tpu_custom_call.1} parent=1 // pred_check_branch
      %26 = sbr.rel (0) target = $region29
    $region28: #{tpu_custom_call.1} parent=1 // pred_region
      _
    $region29: #{tpu_custom_call.1} parent=1 // pred_fallthru
      _
    %v28 = vld [vmem:[%s0] sm:$0xff]
    %v29 = vld [vmem:[%s1] sm:$0x3]
    %v30 = vunpack.c.l.bf16 %v29
    %v31 = vld [vmem:[%s2] sm:$0x1]
    %v33 = vlaneseq
    %v34 = vshrl.u32 %v33, 7
    %v35 = vsub.s32 0, %v34
    %v36 = vrot.slane %v31, %v35
    %39 = vset.pattern.permute.xlu0 0
    %40 = vperm.xlu0 %39, %v28
    %v41 = vpop.permute.xlu0 %40
    %v43 = vlaneseq
    %v44 = vshrl.u32 %v43, 7
    %v45 = vsub.s32 0, %v44
    %v46 = vrot.slane %v30, %v45
    %v47 = vmul.f32 %v41, %v46
    %v48 = vadd.f32 %v36, %v47
    %49 = vset.pattern.permute.xlu0 1
    %50 = vperm.xlu0 %49, %v28
    %v51 = vpop.permute.xlu0 %50
    %v53 = vlaneseq
    %v54 = vshrl.u32 %v53, 7
    %v55 = vsub.s32 1, %v54
    %v56 = vrot.slane %v30, %v55
    %v57 = vmul.f32 %v51, %v56
    %v58 = vadd.f32 %v48, %v57
    %59 = vset.pattern.permute.xlu0 2
    %60 = vperm.xlu0 %59, %v28
    %v61 = vpop.permute.xlu0 %60
    %v63 = vlaneseq
    %v64 = vshrl.u32 %v63, 7
    %v65 = vsub.s32 2, %v64
    %v66 = vrot.slane %v30, %v65
    %v67 = vmul.f32 %v61, %v66
    %v68 = vadd.f32 %v58, %v67
    %69 = vset.pattern.permute.xlu0 3
    %70 = vperm.xlu0 %69, %v28
    %v71 = vpop.permute.xlu0 %70
    %v73 = vlaneseq
    %v74 = vshrl.u32 %v73, 7
    %v75 = vsub.s32 3, %v74
    %v76 = vrot.slane %v30, %v75
    %v77 = vmul.f32 %v71, %v76
    %v78 = vadd.f32 %v68, %v77
    %v79 = vmax.f32 %v78, 0.0
    %v80 = vpack.c.bf16 %v79, %v79
    %v81 = vld [vmem:[%s3] sm:$0xf]
    %v82 = vld [vmem:[%s3 + $0x4] sm:$0xf]
    %v83 = vld [vmem:[%s3 + $0x8] sm:$0xf]
    %v84 = vld [vmem:[%s3 + $0xc] sm:$0xf]
    %v85 = vld [vmem:[%s3 + $0x10] sm:$0xf]
    %v86 = vld [vmem:[%s3 + $0x14] sm:$0xf]
    %v87 = vld [vmem:[%s3 + $0x18] sm:$0xf]
    %v88 = vld [vmem:[%s3 + $0x1c] sm:$0xf]
    %v89 = vld [vmem:[%s4] sm:$0x1]
    %v91 = vlaneseq
    %v92 = vshrl.u32 %v91, 7
    %v93 = vsub.s32 0, %v92
    %v94 = vrot.slane %v89, %v93
    %v104 = vunpack.c.l.b16 %v81
    %v105 = vunpack.c.l.b16 %v82
    %v106 = vunpack.c.l.b16 %v83
    %v107 = vunpack.c.l.b16 %v84
    %v108 = vunpack.c.l.b16 %v85
    %v109 = vunpack.c.l.b16 %v86
    %v110 = vunpack.c.l.b16 %v87
    %v111 = vunpack.c.l.b16 %v88
    %v112 = vpack.c.b16 %v105, %v104
    %v113 = vpack.c.b16 %v107, %v106
    %v114 = vpack.c.b16 %v109, %v108
    %v115 = vpack.c.b16 %v111, %v110
    %vm120 = vcmask 523264
    %v122 = vsel %vm120, %v80, 0
    %124 = vmatprep.subr.bf16.mxu0 0
    %125 = vmatpush1.bf16.msra.mxu0 0
    %126 = vmatprep.subr.bf16.mxu0 0
    %127 = vmatpush1.bf16.msra.mxu0 0
    %128 = vmatprep.subr.bf16.mxu0 0
    %129 = vmatpush1.bf16.msra.mxu0 0
    %130 = vmatprep.subr.bf16.mxu0 0
    %131 = vmatpush1.bf16.msra.mxu0 0
    %132 = vmatprep.subr.bf16.mxu0 0
    %133 = vmatpush1.bf16.msra.mxu0 %v115
    %134 = vmatprep.subr.bf16.mxu0 0
    %135 = vmatpush1.bf16.msra.mxu0 %v114
    %136 = vmatprep.subr.bf16.mxu0 0
    %137 = vmatpush1.bf16.msra.mxu0 %v113
    %138 = vmatprep.subr.bf16.mxu0 0
    %139 = vmatpush1.bf16.msra.mxu0 %v112
    %140 = vmatprep.subr.bf16.mxu0 0
    %141 = vmatpush2.bf16.msra.mxu0 0
    %142 = vmatprep.subr.bf16.mxu0 0
    %143 = vmatpush2.bf16.msra.mxu0 0
    %144 = vmatprep.subr.bf16.mxu0 0
    %145 = vmatpush2.bf16.msra.mxu0 0
    %146 = vmatprep.subr.bf16.mxu0 0
    %147 = vmatpush2.bf16.msra.mxu0 0
    %148 = vmatprep.subr.bf16.mxu0 0
    %149 = vmatpush2.bf16.msra.mxu0 0
    %150 = vmatprep.subr.bf16.mxu0 0
    %151 = vmatpush2.bf16.msra.mxu0 0
    %152 = vmatprep.subr.bf16.mxu0 0
    %153 = vmatpush2.bf16.msra.mxu0 0
    %154 = vmatprep.subr.bf16.mxu0 0
    %155 = vmatpush2.bf16.msra.mxu0 0
    %156 = vmatprep.mubr.bf16.mxu0 0
    %157 = vmatmul.mubr.bf16.gmra.mxu0 %v122
    %v158 = vpop.f32.mrf.mxu0
    %v159 = vadd.f32 %v94, %v158
    %v160 = vpop.f32.mrf.mxu0
    %v161 = vpop.f32.mrf.mxu0
    %v162 = vpop.f32.mrf.mxu0
    %163 = vdwg.mxu0
    %v164 = vmax.f32 %v159, 0.0
    %v165 = vpack.c.bf16 %v164, %v164
    %v166 = vld [vmem:[%s5] sm:$0xf]
    %v167 = vld [vmem:[%s5 + $0x4] sm:$0xf]
    %v168 = vld [vmem:[%s5 + $0x8] sm:$0xf]
    %v169 = vld [vmem:[%s5 + $0xc] sm:$0xf]
    %v170 = vld [vmem:[%s6] sm:$0x1]
    %v172 = vlaneseq
    %v173 = vshrl.u32 %v172, 7
    %v174 = vsub.s32 0, %v173
    %v175 = vrot.slane %v170, %v174
    %v181 = vunpack.c.l.b16 %v166
    %v182 = vunpack.c.l.b16 %v167
    %v183 = vunpack.c.l.b16 %v168
    %v184 = vunpack.c.l.b16 %v169
    %v185 = vpack.c.b16 %v182, %v181
    %v186 = vpack.c.b16 %v184, %v183
    %vm189 = vcmask 261120
    %v191 = vsel %vm189, %v165, 0
    %193 = vmatprep.subr.bf16.mxu0 0
    %194 = vmatpush1.bf16.msra.mxu0 0
    %195 = vmatprep.subr.bf16.mxu0 0
    %196 = vmatpush1.bf16.msra.mxu0 0
    %197 = vmatprep.subr.bf16.mxu0 0
    %198 = vmatpush1.bf16.msra.mxu0 0
    %199 = vmatprep.subr.bf16.mxu0 0
    %200 = vmatpush1.bf16.msra.mxu0 0
    %201 = vmatprep.subr.bf16.mxu0 0
    %202 = vmatpush1.bf16.msra.mxu0 0
    %203 = vmatprep.subr.bf16.mxu0 0
    %204 = vmatpush1.bf16.msra.mxu0 0
    %205 = vmatprep.subr.bf16.mxu0 0
    %206 = vmatpush1.bf16.msra.mxu0 %v186
    %207 = vmatprep.subr.bf16.mxu0 0
    %208 = vmatpush1.bf16.msra.mxu0 %v185
    %209 = vmatprep.subr.bf16.mxu0 0
    %210 = vmatpush2.bf16.msra.mxu0 0
    %211 = vmatprep.subr.bf16.mxu0 0
    %212 = vmatpush2.bf16.msra.mxu0 0
    %213 = vmatprep.subr.bf16.mxu0 0
    %214 = vmatpush2.bf16.msra.mxu0 0
    %215 = vmatprep.subr.bf16.mxu0 0
    %216 = vmatpush2.bf16.msra.mxu0 0
    %217 = vmatprep.subr.bf16.mxu0 0
    %218 = vmatpush2.bf16.msra.mxu0 0
    %219 = vmatprep.subr.bf16.mxu0 0
    %220 = vmatpush2.bf16.msra.mxu0 0
    %221 = vmatprep.subr.bf16.mxu0 0
    %222 = vmatpush2.bf16.msra.mxu0 0
    %223 = vmatprep.subr.bf16.mxu0 0
    %224 = vmatpush2.bf16.msra.mxu0 0
    %225 = vmatprep.mubr.bf16.mxu0 0
    %226 = vmatmul.mubr.bf16.gmra.mxu0 %v191
    %v227 = vpop.f32.mrf.mxu0
    %v228 = vadd.f32 %v175, %v227
    %v229 = vpop.f32.mrf.mxu0
    %v230 = vpop.f32.mrf.mxu0
    %v231 = vpop.f32.mrf.mxu0
    %232 = vdwg.mxu0
    %233 = vmax.xlane.f32.xlu0 %v228
    %v234 = vpop.xlane.xlu0 %233
    %v235 = vsub.f32 %v228, %v234
    %v236 = vmul.f32 %v235, 1.442695
    %v237 = vpow.pop %v236
    %238 = vadd.xlane.f32.xlu0 %v237
    %v239 = vpop.xlane.xlu0 %238
    %v240 = vrcp.pop %v239
    %v241 = vmul.f32 %v237, %v240
    %242 = vst [vmem:[#allocation2] sm:$0xff] %v241
    // Predicated region
    $region30: #{tpu_custom_call.1} parent=1 // pred_check
      _
    $region31: #{tpu_custom_call.1} parent=1 // pred_check_branch
      %244 = sbr.rel (0) target = $region33
    $region32: #{tpu_custom_call.1} parent=1 // pred_region
      %s246 = ssub.s32 128, 128
      %247 = vsyncadd [#allocation3], %s246
      %s249 = sshll.u32 [#allocation2], 4
      %s250 = int_to_ptr.vmem [resolvable:$true] %s249
      %252 = dma.vmem_to_hbm [thread:$0]  %s250, 128, %s7, [#allocation3]
    $region33: #{tpu_custom_call.1} parent=1 // pred_fallthru
      _
    // Predicated region
    $region34: #{tpu_custom_call.1} parent=1 // pred_check
      _
    $region35: #{tpu_custom_call.1} parent=1 // pred_check_branch
      %254 = sbr.rel (0) target = $region37
    $region36: #{tpu_custom_call.1} parent=1 // pred_region
      %255 = dma.done [#allocation3], 128
    $region37: #{tpu_custom_call.1} parent=1 // pred_fallthru
      _
    %256 = vsyncpa [#allocation3], 1

</llo_original>
